<compile_context>
chip_gen: v5e
topology: v5e:2x2
jax: 0.10.0
libtpu: 0.0.40
codegen_flags: <defaults>
</compile_context>

<pallas_src>
import math
import jax
import jax.numpy as jnp
from jax.experimental import pallas as pl
from jax.experimental.pallas import tpu as pltpu


# ---------------------------------------------------------------------------
# helpers
# ---------------------------------------------------------------------------
def _round_up(n, m):
    return ((n + m - 1) // m) * m


def _pad2d(a, rows, cols):
    pr, pc = rows - a.shape[0], cols - a.shape[1]
    if pr == 0 and pc == 0:
        return a
    return jnp.pad(a, ((0, pr), (0, pc)))


# ---------------------------------------------------------------------------
# mask construction (plain JAX — mirrors make_causal_mask_from_ordinal)
# ---------------------------------------------------------------------------
def make_causal_mask_from_ordinal(in_ordinal, out_ordinal, maxv=None, radius=1e-5):
    """mask[i, j] = ((in[i] <= out[j]) AND (in[i] <= max)) OR |in[i] - out[j]| < radius."""
    inp = in_ordinal.astype(jnp.float32)
    out = out_ordinal.astype(jnp.float32)
    if maxv is None:
        maxv = inp[-1] + 10.0
    col = (inp[:, None] <= out[None, :]) & (inp[:, None] <= maxv)
    col = jnp.where(jnp.abs(inp[:, None] - out[None, :]) < radius, True, col)
    return col.astype(jnp.float32)


def fold_causal_mask(weight, mask):
    """Fold the fixed causal mask into the weight ONCE (mask is a buffer,
    exactly like the torch module's `weight` property)."""
    return jnp.where(mask > 0.5, weight, jnp.zeros_like(weight))


# ---------------------------------------------------------------------------
# Pallas kernels
# ---------------------------------------------------------------------------
def _fused_kernel(x_ref, w_ref, b_ref, o_ref):
    # Whole-tile matmul on the MXU + fused bias + ReLU epilogue.
    y = jnp.dot(x_ref[...], w_ref[...], preferred_element_type=jnp.float32)
    o_ref[...] = jnp.maximum(y + b_ref[...], 0.0).astype(o_ref.dtype)


def _tiled_kernel(x_ref, w_ref, b_ref, o_ref, acc_ref):
    # (M, N, K) grid, K innermost; f32 accumulator persists across K.
    k = pl.program_id(2)

    @pl.when(k == 0)
    def _():
        acc_ref[...] = jnp.zeros_like(acc_ref)

    acc_ref[...] += jnp.dot(x_ref[...], w_ref[...],
                            preferred_element_type=jnp.float32)

    @pl.when(k == pl.num_programs(2) - 1)
    def _():
        o_ref[...] = jnp.maximum(acc_ref[...] + b_ref[...], 0.0).astype(o_ref.dtype)


# ---------------------------------------------------------------------------
# wrapper
# ---------------------------------------------------------------------------
def causal_linear_apply(x, w_masked, bias, *, block_rows=256,
                        tm=256, tn=256, tk=512, path=None):
    """x: [B, n_in], w_masked: [n_in, n_out] (mask already folded), bias: [n_out]."""
    B, n_in = x.shape
    n_out = w_masked.shape[1]
    itemsize = jnp.dtype(x.dtype).itemsize

    np_out = _round_up(n_out, 128)                       # lane-dense output
    w_bytes = n_in * np_out * itemsize
    single_bytes = (_round_up(B, 8) * (n_in + np_out)) * itemsize + w_bytes

    if path is None:
        if single_bytes <= (4 << 20):
            path = "single"
        elif w_bytes <= (8 << 20):
            path = "rows"
        else:
            path = "tiled"

    bias2d = bias.astype(jnp.float32).reshape(1, n_out)
    w_cast = w_masked.astype(x.dtype)

    if path == "single":
        # Small problem: whole-array, no grid at all.
        bp = _round_up(B, 8)
        x_p = _pad2d(x, bp, n_in)
        w_p = _pad2d(w_cast, n_in, np_out)
        b_p = _pad2d(bias2d, 1, np_out)
        out_p = pl.pallas_call(
            _fused_kernel,
            out_shape=jax.ShapeDtypeStruct((bp, np_out), x.dtype),
        )(x_p, w_p, b_p)
        return out_p[:B, :n_out]

    if path == "rows":
        # Weight resident in VMEM; rows tiled & independent -> "parallel".
        tm_r = min(block_rows, _round_up(B, 8))
        bp = _round_up(B, tm_r)
        x_p = _pad2d(x, bp, n_in)
        w_p = _pad2d(w_cast, n_in, np_out)
        b_p = _pad2d(bias2d, 1, np_out)
        out_p = pl.pallas_call(
            _fused_kernel,
            out_shape=jax.ShapeDtypeStruct((bp, np_out), x.dtype),
            grid=(bp // tm_r,),
            in_specs=[
                pl.BlockSpec((tm_r, n_in), lambda i: (i, 0)),
                pl.BlockSpec((n_in, np_out), lambda i: (0, 0)),
                pl.BlockSpec((1, np_out), lambda i: (0, 0)),
            ],
            out_specs=pl.BlockSpec((tm_r, np_out), lambda i: (i, 0)),
            compiler_params=pltpu.CompilerParams(
                dimension_semantics=("parallel",)),
        )(x_p, w_p, b_p)
        return out_p[:B, :n_out]

    # "tiled": full (M, N, K) grid with f32 VMEM accumulator (VMEM-safe for
    # large weights; K innermost, output tile resident across K).
    tm_t = min(tm, _round_up(B, 8))
    tn_t = min(tn, np_out)
    tk_t = min(tk, _round_up(n_in, 128))
    bp = _round_up(B, tm_t)
    Np = _round_up(np_out, tn_t)
    Kp = _round_up(n_in, tk_t)

    x_p = _pad2d(x, bp, Kp)
    w_p = _pad2d(w_cast, Kp, Np)
    b_p = _pad2d(bias2d, 1, Np)

    out_p = pl.pallas_call(
        _tiled_kernel,
        out_shape=jax.ShapeDtypeStruct((bp, Np), x.dtype),
        grid=(bp // tm_t, Np // tn_t, Kp // tk_t),
        in_specs=[
            pl.BlockSpec((tm_t, tk_t), lambda i, j, k: (i, k)),
            pl.BlockSpec((tk_t, tn_t), lambda i, j, k: (k, j)),
            pl.BlockSpec((1, tn_t), lambda i, j, k: (0, j)),
        ],
        out_specs=pl.BlockSpec((tm_t, tn_t), lambda i, j, k: (i, j)),
        scratch_shapes=[pltpu.VMEM((tm_t, tn_t), jnp.float32)],
        compiler_params=pltpu.CompilerParams(
            dimension_semantics=("parallel", "parallel", "arbitrary")),
    )(x_p, w_p, b_p)
    return out_p[:B, :n_out]


def causal_linear_block(x, weight, mask, bias, **kw):
    """Convenience: fold the mask (done once per module in real use) + apply."""
    return causal_linear_apply(x, fold_causal_mask(weight, mask), bias, **kw)


# ---------------------------------------------------------------------------
# reference (pure JAX) for sanity
# ---------------------------------------------------------------------------
def causal_linear_block_ref(x, weight, mask, bias):
    w = jnp.where(mask > 0.5, weight, 0.0)
    return jnp.maximum(x @ w + bias, 0.0)


if __name__ == "__main__":
    key = jax.random.PRNGKey(0)
    ks = jax.random.split(key, 9)

    # ---- test 1: small module shapes (whole-array, no-grid path) ----------
    in_features, out_features, batch = 32, 16, 8
    in_ordinal = jnp.linspace(0.0, 1.0, in_features)
    out_ordinal = jnp.linspace(0.0, 1.0, out_features)
    mask = make_causal_mask_from_ordinal(in_ordinal, out_ordinal)

    stdv = 1.0 / math.sqrt(out_features)                 # mirrors reset_parameters()
    weight = jax.random.uniform(ks[0], (in_features, out_features), jnp.float32, -stdv, stdv)
    bias = jax.random.uniform(ks[1], (out_features,), jnp.float32, -stdv, stdv)
    x = jax.random.normal(ks[2], (batch, in_features), jnp.float32)

    out = jax.block_until_ready(causal_linear_block(x, weight, mask, bias))
    ref = causal_linear_block_ref(x, weight, mask, bias)
    assert out.shape == (batch, out_features)
    assert jnp.allclose(out, ref, atol=1e-4, rtol=1e-4), "small-shape mismatch"

    # ---- test 2: larger batch exercising the row-tiled "parallel" path ----
    in2, out2, batch2 = 64, 80, 256
    mask2 = make_causal_mask_from_ordinal(jnp.linspace(0.0, 1.0, in2),
                                          jnp.linspace(0.0, 1.0, out2))
    stdv2 = 1.0 / math.sqrt(out2)
    w2 = jax.random.uniform(ks[3], (in2, out2), jnp.float32, -stdv2, stdv2)
    b2 = jax.random.uniform(ks[4], (out2,), jnp.float32, -stdv2, stdv2)
    x2 = jax.random.normal(ks[5], (batch2, in2), jnp.float32)

    out2_p = jax.block_until_ready(
        causal_linear_block(x2, w2, mask2, b2, block_rows=128, path="rows"))
    ref2 = causal_linear_block_ref(x2, w2, mask2, b2)
    assert out2_p.shape == (batch2, out2)
    assert jnp.allclose(out2_p, ref2, atol=5e-4, rtol=5e-4), "rows-path mismatch"

    # ---- test 3: exercise the (M, N, K)-tiled accumulator path ------------
    in3, out3, batch3 = 256, 320, 192
    mask3 = make_causal_mask_from_ordinal(jnp.linspace(0.0, 1.0, in3),
                                          jnp.linspace(0.0, 1.0, out3))
    stdv3 = 1.0 / math.sqrt(out3)
    w3 = jax.random.uniform(ks[6], (in3, out3), jnp.float32, -stdv3, stdv3)
    b3 = jax.random.uniform(ks[7], (out3,), jnp.float32, -stdv3, stdv3)
    x3 = jax.random.normal(ks[8], (batch3, in3), jnp.float32)

    out3_p = jax.block_until_ready(
        causal_linear_block(x3, w3, mask3, b3, tm=128, tn=128, tk=128, path="tiled"))
    ref3 = causal_linear_block_ref(x3, w3, mask3, b3)
    assert out3_p.shape == (batch3, out3)
    assert jnp.allclose(out3_p, ref3, atol=5e-4, rtol=5e-4), "tiled-path mismatch"

    print("KERNEL_OK")
</pallas_src>

<mosaic_0001>
module attributes {stable_mosaic.version = 11 : i64} {
  func.func @_fused_kernel(%arg0: memref<8x32xf32, #tpu.memory_space<vmem>>, %arg1: memref<32x128xf32, #tpu.memory_space<vmem>>, %arg2: memref<1x128xf32, #tpu.memory_space<vmem>>, %arg3: memref<8x128xf32, #tpu.memory_space<vmem>>) attributes {dimension_semantics = [], scalar_prefetch = 0 : i64, scratch_operands = 0 : i64, tpu.core_type = #tpu.core_type<tc>} {
    %c0 = arith.constant 0 : index
    %c0_0 = arith.constant 0 : index
    %0 = vector.load %arg0[%c0, %c0_0] : memref<8x32xf32, #tpu.memory_space<vmem>>, vector<8x32xf32>
    %c0_1 = arith.constant 0 : index
    %c0_2 = arith.constant 0 : index
    %1 = vector.load %arg1[%c0_1, %c0_2] : memref<32x128xf32, #tpu.memory_space<vmem>>, vector<32x128xf32>
    %cst = arith.constant dense<0.000000e+00> : vector<8x128xf32>
    %2 = tpu.matmul %0, %1, %cst {dimension_numbers = #tpu.dot_dimension_numbers<[1], [0], [0], [1], [0, 0, 1, 1], [], []>} : vector<8x32xf32>, vector<32x128xf32>, vector<8x128xf32> -> vector<8x128xf32>
    %c0_3 = arith.constant 0 : index
    %c0_4 = arith.constant 0 : index
    %3 = vector.load %arg2[%c0_3, %c0_4] : memref<1x128xf32, #tpu.memory_space<vmem>>, vector<1x128xf32>
    %4 = vector.broadcast %3 : vector<1x128xf32> to vector<8x128xf32>
    %5 = arith.addf %2, %4 : vector<8x128xf32>
    %cst_5 = arith.constant 0.000000e+00 : f32
    %6 = vector.broadcast %cst_5 : f32 to vector<8x128xf32>
    %7 = arith.maximumf %5, %6 : vector<8x128xf32>
    %c0_6 = arith.constant 0 : index
    %c0_7 = arith.constant 0 : index
    %8 = vector.load %arg3[%c0_6, %c0_7] : memref<8x128xf32, #tpu.memory_space<vmem>>, vector<8x128xf32>
    tpu.vector_store %arg3[%c0_6, %c0_7], %7 {strides = array<i32>} : memref<8x128xf32, #tpu.memory_space<vmem>>, vector<8x128xf32>,
    return
  }
}

</mosaic_0001>

<llo_original>
// kernel: tpu_custom_call.1
$region0: #{tpu_custom_call.1}
  #allocation0 [shape = 'u32[]', space=smem, size = 0x4, offset = 0x4, fixed_abs, tag = 'smem constant byte address 0x4 - core index']
  #allocation1 [shape = 'u32[72,128]{1,0:T(1,128)}', space=vmem, size = 0x9000, scoped, tag = 'internal scratch']
  %s0 = inlined_call_operand.hbm [shape: f32[8,32], index: 0, kind: input, shape index: {}]
  %s1 = inlined_call_operand.hbm [shape: f32[32,128], index: 1, kind: input, shape index: {}]
  %s2 = inlined_call_operand.vmem [shape: f32[1,128], index: 2, kind: input, shape index: {}]
  %s3 = inlined_call_operand.hbm [shape: f32[8,128], index: 3, kind: output, shape index: {}]
  %s4 = sld [smem:[#allocation0]]
  $region30: #{tpu_custom_call.1} parent=0
    _
  %s6 = ssub.s32 1, %s4
  %s7 = scalar_select 0, %s6, %s4
  $region1: #{tpu_custom_call.1} parent=0
    #allocation2 [shape = 'u8[4096]{0}', space=vmem, size = 0x1000, scoped, tag = 'input window, operand 0, single buffered']
    #allocation3 [shape = 's32[1]{0}', space=sflag, size = 0x4, scoped, tag = 'scoped memory for tpu_custom_call.1']
    #allocation4 [shape = 's32[1]{0}', space=sflag, size = 0x4, scoped, tag = 'scoped memory for tpu_custom_call.1']
    #allocation5 [shape = 'u8[16384]{0}', space=vmem, size = 0x4000, scoped, tag = 'input window, operand 1, single buffered']
    #allocation6 [shape = 's32[1]{0}', space=sflag, size = 0x4, scoped, tag = 'scoped memory for tpu_custom_call.1']
    #allocation7 [shape = 'u8[4096]{0}', space=vmem, size = 0x1000, scoped, tag = 'output window, operand 0, single buffered']
    %8 = vsyncpa [#allocation3], 0
    %9 = vsyncpa [#allocation6], 0
    %10 = vsyncpa [#allocation4], 0
    // Predicated region
    $region2: #{tpu_custom_call.1} parent=1 // pred_check
      _
    $region3: #{tpu_custom_call.1} parent=1 // pred_check_branch
      %12 = sbr.rel (0) target = $region5
    $region4: #{tpu_custom_call.1} parent=1 // pred_region
      %14 = vsyncadd [#allocation3], 0
      %s16 = sshll.u32 %s0, 4
      %s17 = int_to_ptr.hbm [resolvable:$true] %s16
      %s18 = sshll.u32 [#allocation2], 4
      %s19 = int_to_ptr.vmem [resolvable:$true] %s18
      %21 = dma.hbm_to_vmem [thread:$0]  %s17, 128, %s19, [#allocation3]
    $region5: #{tpu_custom_call.1} parent=1 // pred_fallthru
      _
    // Predicated region
    $region6: #{tpu_custom_call.1} parent=1 // pred_check
      _
    $region7: #{tpu_custom_call.1} parent=1 // pred_check_branch
      %23 = sbr.rel (0) target = $region9
    $region8: #{tpu_custom_call.1} parent=1 // pred_region
      %25 = vsyncadd [#allocation6], 0
      %s26 = sshll.u32 %s1, 4
      %s27 = int_to_ptr.hbm [resolvable:$true] %s26
      %s28 = sshll.u32 [#allocation5], 4
      %s29 = int_to_ptr.vmem [resolvable:$true] %s28
      %34 = dma.hbm_to_vmem [thread:$0]  %s27, 512, %s29, [#allocation6], 128, 128, 8
    $region9: #{tpu_custom_call.1} parent=1 // pred_fallthru
      _
    // Predicated region
    $region10: #{tpu_custom_call.1} parent=1 // pred_check
      _
    $region11: #{tpu_custom_call.1} parent=1 // pred_check_branch
      %36 = sbr.rel (0) target = $region13
    $region12: #{tpu_custom_call.1} parent=1 // pred_region
      _
    $region13: #{tpu_custom_call.1} parent=1 // pred_fallthru
      _
    // Predicated region
    $region14: #{tpu_custom_call.1} parent=1 // pred_check
      _
    $region15: #{tpu_custom_call.1} parent=1 // pred_check_branch
      %38 = sbr.rel (0) target = $region17
    $region16: #{tpu_custom_call.1} parent=1 // pred_region
      %40 = dma.done [#allocation3], 128
    $region17: #{tpu_custom_call.1} parent=1 // pred_fallthru
      _
    // Predicated region
    $region18: #{tpu_custom_call.1} parent=1 // pred_check
      _
    $region19: #{tpu_custom_call.1} parent=1 // pred_check_branch
      %42 = sbr.rel (0) target = $region21
    $region20: #{tpu_custom_call.1} parent=1 // pred_region
      %44 = dma.done [#allocation6], 512
    $region21: #{tpu_custom_call.1} parent=1 // pred_fallthru
      _
    %v45 = vld [vmem:[#allocation2] sm:$0xff]
    %v46 = vld [vmem:[#allocation5] sm:$0xff]
    %v47 = vld [vmem:[#allocation5 + $0x8] sm:$0xff]
    %v48 = vld [vmem:[#allocation5 + $0x10] sm:$0xff]
    %v49 = vld [vmem:[#allocation5 + $0x18] sm:$0xff]
    %v50 = vld [vmem:[%s2] sm:$0x1]
    %v52 = vperm.slane %v50, 0
    %vm54 = vcmask 261120
    %v56 = vsel %vm54, %v45, 0
    %58 = vmatpush.msra.mxu0 0.0
    %59 = vmatpush.msra.mxu0 0.0
    %60 = vmatpush.msra.mxu0 0.0
    %61 = vmatpush.msra.mxu0 0.0
    %62 = vmatpush.msra.mxu0 0.0
    %63 = vmatpush.msra.mxu0 0.0
    %64 = vmatpush.msra.mxu0 0.0
    %65 = vmatpush.msra.mxu0 0.0
    %66 = vmatpush.msra.mxu0 0.0
    %67 = vmatpush.msra.mxu0 0.0
    %68 = vmatpush.msra.mxu0 0.0
    %69 = vmatpush.msra.mxu0 0.0
    %70 = vmatpush.msra.mxu0 %v49
    %71 = vmatpush.msra.mxu0 %v48
    %72 = vmatpush.msra.mxu0 %v47
    %73 = vmatpush.msra.mxu0 %v46
    %74 = vmatmul.f32.gmra.mxu0 %v56
    %v75 = vpop.f32.mrf.mxu0
    %v76 = vadd.f32 %v52, %v75
    %77 = vdwg.mxu0
    %v78 = vmax.f32 %v76, 0.0
    %79 = vst [vmem:[#allocation7] sm:$0xff] %v78
    // Predicated region
    $region22: #{tpu_custom_call.1} parent=1 // pred_check
      _
    $region23: #{tpu_custom_call.1} parent=1 // pred_check_branch
      %81 = sbr.rel (0) target = $region25
    $region24: #{tpu_custom_call.1} parent=1 // pred_region
      %83 = vsyncadd [#allocation4], 0
      %s85 = sshll.u32 [#allocation7], 4
      %s86 = int_to_ptr.vmem [resolvable:$true] %s85
      %s87 = sshll.u32 %s3, 4
      %s88 = int_to_ptr.hbm [resolvable:$true] %s87
      %90 = dma.vmem_to_hbm [thread:$0]  %s86, 128, %s88, [#allocation4]
    $region25: #{tpu_custom_call.1} parent=1 // pred_fallthru
      _
    // Predicated region
    $region26: #{tpu_custom_call.1} parent=1 // pred_check
      _
    $region27: #{tpu_custom_call.1} parent=1 // pred_check_branch
      %92 = sbr.rel (0) target = $region29
    $region28: #{tpu_custom_call.1} parent=1 // pred_region
      %94 = dma.done [#allocation4], 128
    $region29: #{tpu_custom_call.1} parent=1 // pred_fallthru
      _
    %95 = vsyncpa [#allocation3], 1
    %96 = vsyncpa [#allocation6], 1
    %97 = vsyncpa [#allocation4], 1

</llo_original>
